<compile_context>
chip_gen: v6e
topology: v6e:2x2x1
jax: 0.10.0
libtpu: 0.0.40
codegen_flags: <defaults>
</compile_context>

<pallas_src>
import jax
import jax.numpy as jnp
from jax.experimental import pallas as pl
from jax.experimental.pallas import tpu as pltpu


def _round_up(x, m):
    return ((x + m - 1) // m) * m


def _pad2(a, shape):
    pads = [(0, t - s) for s, t in zip(a.shape, shape)]
    if all(p == (0, 0) for p in pads):
        return a
    return jnp.pad(a, pads)


# --------------------------------------------------------------------------
# Kernels
# --------------------------------------------------------------------------

def _ffn_single_kernel(x_ref, w1_ref, b1_ref, w2_ref, b2_ref, o_ref):
    """Weights VMEM-resident: full hidden dim contracted in one step."""
    x = x_ref[...].astype(w1_ref.dtype)                    # cast in-kernel
    h = jnp.dot(x, w1_ref[...], preferred_element_type=jnp.float32)
    h = jnp.maximum(h + b1_ref[...], 0.0)                  # bias + ReLU in f32
    y = jnp.dot(h.astype(w2_ref.dtype), w2_ref[...],
                preferred_element_type=jnp.float32)
    # Dropout(p=0) is the identity.
    o_ref[...] = (y + b2_ref[...]).astype(o_ref.dtype)


def _ffn_chunked_kernel_f32out(x_ref, w1_ref, b1_ref, w2_ref, b2_ref, o_ref):
    """Hidden-chunk reduction; accumulate directly into the f32 output tile
    (its block index is constant along k, so it stays VMEM-resident)."""
    k = pl.program_id(1)
    x = x_ref[...].astype(w1_ref.dtype)
    h = jnp.dot(x, w1_ref[...], preferred_element_type=jnp.float32)
    h = jnp.maximum(h + b1_ref[...], 0.0)
    contrib = jnp.dot(h.astype(w2_ref.dtype), w2_ref[...],
                      preferred_element_type=jnp.float32)

    @pl.when(k == 0)
    def _init():
        o_ref[...] = contrib + b2_ref[...]

    @pl.when(k != 0)
    def _accum():
        o_ref[...] += contrib


def _ffn_chunked_kernel_scratch(x_ref, w1_ref, b1_ref, w2_ref, b2_ref, o_ref,
                                acc_ref):
    """Hidden-chunk reduction with an f32 scratch accumulator (non-f32 out)."""
    k = pl.program_id(1)
    x = x_ref[...].astype(w1_ref.dtype)
    h = jnp.dot(x, w1_ref[...], preferred_element_type=jnp.float32)
    h = jnp.maximum(h + b1_ref[...], 0.0)
    contrib = jnp.dot(h.astype(w2_ref.dtype), w2_ref[...],
                      preferred_element_type=jnp.float32)

    @pl.when(k == 0)
    def _init():
        acc_ref[...] = contrib

    @pl.when(k != 0)
    def _accum():
        acc_ref[...] += contrib

    @pl.when(k == pl.num_programs(1) - 1)
    def _finalize():
        o_ref[...] = (acc_ref[...] + b2_ref[...]).astype(o_ref.dtype)


# --------------------------------------------------------------------------
# Tile selection (per-generation, VMEM-budget driven)
# --------------------------------------------------------------------------

def _tpu_vmem_bytes():
    try:
        return int(pltpu.get_tpu_info().vmem_capacity_bytes)
    except Exception:
        return 64 << 20   # conservative fallback (v7x per-TC VMEM)


def _device_kind():
    try:
        return jax.devices()[0].device_kind.lower()
    except Exception:
        return ""


def _choose_tiles(M, E_p, H_p, x_bytes, out_bytes, cb, f32_out):
    vmem = _tpu_vmem_bytes()
    kind = _device_kind()
    small_vmem = vmem <= (64 << 20)          # v7x-class: 64 MiB per TensorCore
    budget = int(vmem * 0.85)                # leave pipeline/compiler headroom

    # Row-tile target per generation (AI ~= tm flops / weight byte when the
    # weights are re-streamed once per row tile).
    if ("v5e" in kind) or ("v5 lite" in kind):
        tm_target = 384          # v5e: ~0.82 TB/s vs 197 TF/s, already balanced
    elif small_vmem:
        tm_target = 512          # v7x: ~310 flop/B per-TC roofline, 64 MiB VMEM
    else:
        tm_target = 1024         # v6e: ~1.4 TB/s vs 918 TF/s

    # Row tile: multiple of 16 (bf16 sublane packing); never blow up M padding.
    tm = min(tm_target, max(16, _round_up(M, 16)))
    # On the 2-TensorCore generation, keep >= 2 row tiles on the parallel axis.
    if small_vmem and M > 16 and _round_up(M, tm) // tm < 2:
        tm = min(tm, max(16, _round_up(-(-M // 2), 16)))

    def est_single(tm_):
        return (2 * tm_ * E_p * x_bytes      # x tiles   (double buffered)
                + 2 * tm_ * E_p * out_bytes  # out tiles
                + 2 * E_p * H_p * cb         # W1 (counted double buffered)
                + 2 * H_p * E_p * cb         # W2
                + 2 * (H_p + E_p) * 4)       # biases

    def est_chunked(tm_, tk_):
        e = (2 * tm_ * E_p * x_bytes
             + 2 * tm_ * E_p * out_bytes
             + 2 * E_p * tk_ * cb            # W1 slice
             + 2 * tk_ * E_p * cb            # W2 slice
             + 2 * (tk_ + E_p) * 4)
        if not f32_out:
            e += tm_ * E_p * 4               # f32 scratch accumulator
        return e

    # Prefer the weights-resident path: weights are streamed from HBM exactly
    # once, independent of tm, so smaller tm is harmless here.
    tm_s = tm
    while est_single(tm_s) > budget and tm_s > 128:
        tm_s = max(128, _round_up(tm_s // 2, 16))
    if est_single(tm_s) <= budget:
        limit = min(vmem, max(32 << 20, est_single(tm_s) + (8 << 20)))
        return tm_s, None, int(limit)

    # Otherwise chunk the hidden (reduction) axis, innermost in the grid.
    tk_cands = [c for c in (512, 384, 256, 128) if c <= H_p and H_p % c == 0]
    if small_vmem:
        tk_cands = [c for c in tk_cands if c <= 256] or tk_cands
    tk = tk_cands[0]
    # Shrink tk first (it does not change arithmetic intensity), tm last.
    while est_chunked(tm, tk) > budget and len(tk_cands) > 1:
        tk_cands.pop(0)
        tk = tk_cands[0]
    while est_chunked(tm, tk) > budget and tm > 128:
        tm = max(128, _round_up(tm // 2, 16))
    limit = min(vmem, max(32 << 20, est_chunked(tm, tk) + (8 << 20)))
    return tm, tk, int(limit)


# --------------------------------------------------------------------------
# Wrapper
# --------------------------------------------------------------------------

def prepare_params(w1, b1, w2, b2, compute_dtype=jnp.bfloat16):
    """Pad feature dims to multiples of 128 and cast weights to the MXU dtype,
    ONCE (not per forward call).  Zero padding is mathematically exact."""
    n_embed, hidden = w1.shape
    E_p = _round_up(n_embed, 128)
    H_p = _round_up(hidden, 128)
    return dict(
        w1=_pad2(w1.astype(compute_dtype), (E_p, H_p)),
        w2=_pad2(w2.astype(compute_dtype), (H_p, E_p)),
        b1=_pad2(b1.reshape(1, hidden).astype(jnp.float32), (1, H_p)),
        b2=_pad2(b2.reshape(1, n_embed).astype(jnp.float32), (1, E_p)),
        n_embed=n_embed, hidden=hidden)


def feed_forward(x, params):
    """x: (batch, seq, n_embed) -> (batch, seq, n_embed)."""
    w1p, b1p, w2p, b2p = params["w1"], params["b1"], params["w2"], params["b2"]
    n_embed = params["n_embed"]
    E_p, H_p = w1p.shape
    batch, seq, _ = x.shape
    M = batch * seq

    out_dtype = x.dtype
    f32_out = out_dtype == jnp.float32
    cb = jnp.dtype(w1p.dtype).itemsize
    xb = jnp.dtype(x.dtype).itemsize
    ob = jnp.dtype(out_dtype).itemsize

    tm, tk, vmem_limit = _choose_tiles(M, E_p, H_p, xb, ob, cb, f32_out)
    M_p = _round_up(M, tm)
    n_row_tiles = M_p // tm

    # x stays in its original dtype (cast happens inside the kernel).
    x2d = _pad2(x.reshape(M, n_embed), (M_p, E_p))

    # Advisory cost estimate for XLA's scheduler.
    flops = 4 * M_p * E_p * H_p
    w_elems = 2 * E_p * H_p
    weight_bytes = w_elems * cb if tk is None else n_row_tiles * w_elems * cb
    cost = pl.CostEstimate(
        flops=flops, transcendentals=0,
        bytes_accessed=int(weight_bytes + M_p * E_p * (xb + ob)))

    if tk is None:
        # Weights VMEM-resident; constant index_map -> DMA'd once total.
        out2d = pl.pallas_call(
            _ffn_single_kernel,
            out_shape=jax.ShapeDtypeStruct((M_p, E_p), out_dtype),
            grid=(n_row_tiles,),
            in_specs=[
                pl.BlockSpec((tm, E_p), lambda i: (i, 0)),     # x row tile
                pl.BlockSpec((E_p, H_p), lambda i: (0, 0)),    # W1 (full)
                pl.BlockSpec((1, H_p), lambda i: (0, 0)),      # b1
                pl.BlockSpec((H_p, E_p), lambda i: (0, 0)),    # W2 (full)
                pl.BlockSpec((1, E_p), lambda i: (0, 0)),      # b2
            ],
            out_specs=pl.BlockSpec((tm, E_p), lambda i: (i, 0)),
            compiler_params=pltpu.CompilerParams(
                dimension_semantics=("parallel",),
                vmem_limit_bytes=vmem_limit),
            cost_estimate=cost,
        )(x2d, w1p, b1p, w2p, b2p)
    else:
        kernel = (_ffn_chunked_kernel_f32out if f32_out
                  else _ffn_chunked_kernel_scratch)
        scratch = [] if f32_out else [pltpu.VMEM((tm, E_p), jnp.float32)]
        out2d = pl.pallas_call(
            kernel,
            out_shape=jax.ShapeDtypeStruct((M_p, E_p), out_dtype),
            grid=(n_row_tiles, H_p // tk),
            in_specs=[
                pl.BlockSpec((tm, E_p), lambda i, k: (i, 0)),   # x row tile
                pl.BlockSpec((E_p, tk), lambda i, k: (0, k)),   # W1 chunk
                pl.BlockSpec((1, tk), lambda i, k: (0, k)),     # b1 chunk
                pl.BlockSpec((tk, E_p), lambda i, k: (k, 0)),   # W2 chunk
                pl.BlockSpec((1, E_p), lambda i, k: (0, 0)),    # b2
            ],
            out_specs=pl.BlockSpec((tm, E_p), lambda i, k: (i, 0)),
            scratch_shapes=scratch,
            compiler_params=pltpu.CompilerParams(
                dimension_semantics=("parallel", "arbitrary"),
                vmem_limit_bytes=vmem_limit),
            cost_estimate=cost,
        )(x2d, w1p, b1p, w2p, b2p)

    return out2d[:M, :n_embed].reshape(batch, seq, n_embed)


def init_params(key, n_embed, hidden_dim, dtype=jnp.float32):
    """Deterministic init matching nn.Linear's U(-1/sqrt(fan_in), 1/sqrt(fan_in))."""
    k1, k2, k3, k4 = jax.random.split(key, 4)
    lim1 = 1.0 / (n_embed ** 0.5)
    lim2 = 1.0 / (hidden_dim ** 0.5)
    w1 = jax.random.uniform(k1, (n_embed, hidden_dim), dtype, -lim1, lim1)
    b1 = jax.random.uniform(k2, (hidden_dim,), dtype, -lim1, lim1)
    w2 = jax.random.uniform(k3, (hidden_dim, n_embed), dtype, -lim2, lim2)
    b2 = jax.random.uniform(k4, (n_embed,), dtype, -lim2, lim2)
    return w1, b1, w2, b2


if __name__ == "__main__":
    key = jax.random.PRNGKey(0)
    batch, seq, n_embed, hidden_dim = 2, 8, 32, 64

    kx, kp = jax.random.split(key)
    x = jax.random.normal(kx, (batch, seq, n_embed), dtype=jnp.float32)
    w1, b1, w2, b2 = init_params(kp, n_embed, hidden_dim)

    params = prepare_params(w1, b1, w2, b2)           # pad/cast weights ONCE
    out = jax.block_until_ready(feed_forward(x, params))
    assert out.shape == (batch, seq, n_embed)

    # Reference 1: same bf16-operand / f32-accumulate math as the kernel.
    xb = x.reshape(-1, n_embed).astype(jnp.bfloat16)
    hb = jnp.dot(xb, w1.astype(jnp.bfloat16),
                 preferred_element_type=jnp.float32) + b1
    hb = jnp.maximum(hb, 0.0)
    ref_bf16 = (jnp.dot(hb.astype(jnp.bfloat16), w2.astype(jnp.bfloat16),
                        preferred_element_type=jnp.float32) + b2
                ).reshape(batch, seq, n_embed)
    assert jnp.allclose(out, ref_bf16, atol=5e-3, rtol=5e-3)

    # Reference 2: full-precision forward semantics (sanity on bf16 compute).
    h32 = jnp.maximum(
        jnp.dot(x.reshape(-1, n_embed), w1, precision="highest") + b1, 0.0)
    ref_f32 = (jnp.dot(h32, w2, precision="highest") + b2
               ).reshape(batch, seq, n_embed)
    assert jnp.allclose(out, ref_f32, atol=5e-2, rtol=5e-2)

    print("KERNEL_OK")
</pallas_src>

<mosaic_0001>
module attributes {stable_mosaic.version = 11 : i64} {
  func.func @_ffn_single_kernel(%arg0: i32, %arg1: memref<16x128xf32, #tpu.memory_space<vmem>>, %arg2: memref<128x128xbf16, #tpu.memory_space<vmem>>, %arg3: memref<1x128xf32, #tpu.memory_space<vmem>>, %arg4: memref<128x128xbf16, #tpu.memory_space<vmem>>, %arg5: memref<1x128xf32, #tpu.memory_space<vmem>>, %arg6: memref<16x128xf32, #tpu.memory_space<vmem>>) attributes {dimension_semantics = [#tpu.dimension_semantics<parallel>], iteration_bounds = array<i64: 1>, scalar_prefetch = 0 : i64, scratch_operands = 0 : i64, tpu.core_type = #tpu.core_type<tc>, window_params = [{transform_indices = @transform_0, window_bounds = array<i64: 16, 128>}, {pipeline_mode = #tpu.pipeline_mode<synchronous>, transform_indices = @transform_1, window_bounds = array<i64: 128, 128>}, {pipeline_mode = #tpu.pipeline_mode<synchronous>, transform_indices = @transform_2, window_bounds = array<i64: 1, 128>}, {pipeline_mode = #tpu.pipeline_mode<synchronous>, transform_indices = @transform_3, window_bounds = array<i64: 128, 128>}, {pipeline_mode = #tpu.pipeline_mode<synchronous>, transform_indices = @transform_4, window_bounds = array<i64: 1, 128>}, {transform_indices = @transform_5, window_bounds = array<i64: 16, 128>}]} {
    %c0 = arith.constant 0 : index
    %c0_0 = arith.constant 0 : index
    %0 = vector.load %arg1[%c0, %c0_0] : memref<16x128xf32, #tpu.memory_space<vmem>>, vector<16x128xf32>
    %1 = arith.truncf %0 : vector<16x128xf32> to vector<16x128xbf16>
    %c0_1 = arith.constant 0 : index
    %c0_2 = arith.constant 0 : index
    %2 = vector.load %arg2[%c0_1, %c0_2] : memref<128x128xbf16, #tpu.memory_space<vmem>>, vector<128x128xbf16>
    %cst = arith.constant dense<0.000000e+00> : vector<16x128xf32>
    %3 = tpu.matmul %1, %2, %cst {dimension_numbers = #tpu.dot_dimension_numbers<[1], [0], [0], [1], [0, 0, 1, 1], [], []>} : vector<16x128xbf16>, vector<128x128xbf16>, vector<16x128xf32> -> vector<16x128xf32>
    %c0_3 = arith.constant 0 : index
    %c0_4 = arith.constant 0 : index
    %4 = vector.load %arg3[%c0_3, %c0_4] : memref<1x128xf32, #tpu.memory_space<vmem>>, vector<1x128xf32>
    %5 = vector.broadcast %4 : vector<1x128xf32> to vector<16x128xf32>
    %6 = arith.addf %3, %5 : vector<16x128xf32>
    %cst_5 = arith.constant 0.000000e+00 : f32
    %7 = vector.broadcast %cst_5 : f32 to vector<16x128xf32>
    %8 = arith.maximumf %6, %7 : vector<16x128xf32>
    %9 = arith.truncf %8 : vector<16x128xf32> to vector<16x128xbf16>
    %c0_6 = arith.constant 0 : index
    %c0_7 = arith.constant 0 : index
    %10 = vector.load %arg4[%c0_6, %c0_7] : memref<128x128xbf16, #tpu.memory_space<vmem>>, vector<128x128xbf16>
    %cst_8 = arith.constant dense<0.000000e+00> : vector<16x128xf32>
    %11 = tpu.matmul %9, %10, %cst_8 {dimension_numbers = #tpu.dot_dimension_numbers<[1], [0], [0], [1], [0, 0, 1, 1], [], []>} : vector<16x128xbf16>, vector<128x128xbf16>, vector<16x128xf32> -> vector<16x128xf32>
    %c0_9 = arith.constant 0 : index
    %c0_10 = arith.constant 0 : index
    %12 = vector.load %arg5[%c0_9, %c0_10] : memref<1x128xf32, #tpu.memory_space<vmem>>, vector<1x128xf32>
    %13 = vector.broadcast %12 : vector<1x128xf32> to vector<16x128xf32>
    %14 = arith.addf %11, %13 : vector<16x128xf32>
    %c0_11 = arith.constant 0 : index
    %c0_12 = arith.constant 0 : index
    %15 = vector.load %arg6[%c0_11, %c0_12] : memref<16x128xf32, #tpu.memory_space<vmem>>, vector<16x128xf32>
    tpu.vector_store %arg6[%c0_11, %c0_12], %14 {strides = array<i32>} : memref<16x128xf32, #tpu.memory_space<vmem>>, vector<16x128xf32>,
    return
  }
  func.func @transform_0(%arg0: i32) -> (i32, i32) {
    %c0_i32 = arith.constant 0 : i32
    %c0_i32_0 = arith.constant 0 : i32
    return %arg0, %c0_i32 : i32, i32
  }
  func.func @transform_1(%arg0: i32) -> (i32, i32) {
    %c0_i32 = arith.constant 0 : i32
    %c0_i32_0 = arith.constant 0 : i32
    %c0_i32_1 = arith.constant 0 : i32
    return %c0_i32, %c0_i32_0 : i32, i32
  }
  func.func @transform_2(%arg0: i32) -> (i32, i32) {
    %c0_i32 = arith.constant 0 : i32
    %c0_i32_0 = arith.constant 0 : i32
    %c0_i32_1 = arith.constant 0 : i32
    return %c0_i32, %c0_i32_0 : i32, i32
  }
  func.func @transform_3(%arg0: i32) -> (i32, i32) {
    %c0_i32 = arith.constant 0 : i32
    %c0_i32_0 = arith.constant 0 : i32
    %c0_i32_1 = arith.constant 0 : i32
    return %c0_i32, %c0_i32_0 : i32, i32
  }
  func.func @transform_4(%arg0: i32) -> (i32, i32) {
    %c0_i32 = arith.constant 0 : i32
    %c0_i32_0 = arith.constant 0 : i32
    %c0_i32_1 = arith.constant 0 : i32
    return %c0_i32, %c0_i32_0 : i32, i32
  }
  func.func @transform_5(%arg0: i32) -> (i32, i32) {
    %c0_i32 = arith.constant 0 : i32
    %c0_i32_0 = arith.constant 0 : i32
    return %arg0, %c0_i32 : i32, i32
  }
}

</mosaic_0001>

<llo_original>
// kernel: tpu_custom_call.1
$region0: #{tpu_custom_call.1}
  #allocation0 [shape = 'u32[]', space=smem, size = 0x4, offset = 0x4, fixed_abs, tag = 'smem constant byte address 0x4 - core index']
  #allocation1 [shape = 'u32[144,128]{1,0:T(1,128)}', space=vmem, size = 0x12000, scoped, tag = 'internal scratch']
  %s0 = inlined_call_operand.hbm [shape: f32[16,128], index: 0, kind: input, shape index: {}]
  %s1 = inlined_call_operand.hbm [shape: bf16[128,128], index: 1, kind: input, shape index: {}]
  %s2 = inlined_call_operand.vmem [shape: f32[1,128], index: 2, kind: input, shape index: {}]
  %s3 = inlined_call_operand.hbm [shape: bf16[128,128], index: 3, kind: input, shape index: {}]
  %s4 = inlined_call_operand.vmem [shape: f32[1,128], index: 4, kind: input, shape index: {}]
  %s5 = inlined_call_operand.hbm [shape: f32[16,128], index: 5, kind: output, shape index: {}]
  %s6 = sld [smem:[#allocation0]]
  $region42: #{tpu_custom_call.1} parent=0
    _
  %s8 = ssub.s32 1, %s6
  %s9 = scalar_select 0, %s8, %s6
  $region1: #{tpu_custom_call.1} parent=0
    #allocation2 [shape = 'u8[8192]{0}', space=vmem, size = 0x2000, scoped, tag = 'input window, operand 0, single buffered']
    #allocation3 [shape = 's32[1]{0}', space=sflag, size = 0x4, scoped, tag = 'scoped memory for tpu_custom_call.1']
    #allocation4 [shape = 's32[1]{0}', space=sflag, size = 0x4, scoped, tag = 'scoped memory for tpu_custom_call.1']
    #allocation5 [shape = 'u8[32768]{0}', space=vmem, size = 0x8000, scoped, tag = 'input window, operand 1, single buffered']
    #allocation6 [shape = 's32[1]{0}', space=sflag, size = 0x4, scoped, tag = 'scoped memory for tpu_custom_call.1']
    #allocation7 [shape = 'u8[32768]{0}', space=vmem, size = 0x8000, scoped, tag = 'input window, operand 3, single buffered']
    #allocation8 [shape = 'u8[8192]{0}', space=vmem, size = 0x2000, scoped, tag = 'output window, operand 0, single buffered']
    %10 = vsyncpa [#allocation3], 0
    %11 = vsyncpa [#allocation6], 0
    %12 = vsyncpa [#allocation4], 0
    // Predicated region
    $region2: #{tpu_custom_call.1} parent=1 // pred_check
      _
    $region3: #{tpu_custom_call.1} parent=1 // pred_check_branch
      %14 = sbr.rel (0) target = $region5
    $region4: #{tpu_custom_call.1} parent=1 // pred_region
      %s16 = ssub.s32 256, 256
      %17 = vsyncadd [#allocation3], %s16
      %s18 = sshll.u32 [#allocation2], 4
      %s19 = int_to_ptr.vmem [resolvable:$true] %s18
      %24 = dma.hbm_to_vmem [thread:$0]  %s0, 256, %s19, [#allocation3], 128, 128, 8
    $region5: #{tpu_custom_call.1} parent=1 // pred_fallthru
      _
    // Predicated region
    $region6: #{tpu_custom_call.1} parent=1 // pred_check
      _
    $region7: #{tpu_custom_call.1} parent=1 // pred_check_branch
      %26 = sbr.rel (0) target = $region9
    $region8: #{tpu_custom_call.1} parent=1 // pred_region
      %s28 = ssub.s32 1024, 1024
      %29 = vsyncadd [#allocation6], %s28
      %s30 = sshll.u32 [#allocation5], 4
      %s31 = int_to_ptr.vmem [resolvable:$true] %s30
      %36 = dma.hbm_to_vmem [thread:$0]  %s1, 1024, %s31, [#allocation6], 64, 64, 4
    $region9: #{tpu_custom_call.1} parent=1 // pred_fallthru
      _
    // Predicated region
    $region10: #{tpu_custom_call.1} parent=1 // pred_check
      _
    $region11: #{tpu_custom_call.1} parent=1 // pred_check_branch
      %38 = sbr.rel (0) target = $region13
    $region12: #{tpu_custom_call.1} parent=1 // pred_region
      _
    $region13: #{tpu_custom_call.1} parent=1 // pred_fallthru
      _
    // Predicated region
    $region14: #{tpu_custom_call.1} parent=1 // pred_check
      _
    $region15: #{tpu_custom_call.1} parent=1 // pred_check_branch
      %40 = sbr.rel (0) target = $region17
    $region16: #{tpu_custom_call.1} parent=1 // pred_region
      %s42 = ssub.s32 1024, 1024
      %43 = vsyncadd [#allocation6], %s42
      %s44 = sshll.u32 [#allocation7], 4
      %s45 = int_to_ptr.vmem [resolvable:$true] %s44
      %50 = dma.hbm_to_vmem [thread:$0]  %s3, 1024, %s45, [#allocation6], 64, 64, 4
    $region17: #{tpu_custom_call.1} parent=1 // pred_fallthru
      _
    // Predicated region
    $region18: #{tpu_custom_call.1} parent=1 // pred_check
      _
    $region19: #{tpu_custom_call.1} parent=1 // pred_check_branch
      %52 = sbr.rel (0) target = $region21
    $region20: #{tpu_custom_call.1} parent=1 // pred_region
      _
    $region21: #{tpu_custom_call.1} parent=1 // pred_fallthru
      _
    // Predicated region
    $region22: #{tpu_custom_call.1} parent=1 // pred_check
      _
    $region23: #{tpu_custom_call.1} parent=1 // pred_check_branch
      %54 = sbr.rel (0) target = $region25
    $region24: #{tpu_custom_call.1} parent=1 // pred_region
      %55 = dma.done [#allocation3], 256
    $region25: #{tpu_custom_call.1} parent=1 // pred_fallthru
      _
    // Predicated region
    $region26: #{tpu_custom_call.1} parent=1 // pred_check
      _
    $region27: #{tpu_custom_call.1} parent=1 // pred_check_branch
      %57 = sbr.rel (0) target = $region29
    $region28: #{tpu_custom_call.1} parent=1 // pred_region
      %58 = dma.done [#allocation6], 1024
    $region29: #{tpu_custom_call.1} parent=1 // pred_fallthru
      _
    // Predicated region
    $region30: #{tpu_custom_call.1} parent=1 // pred_check
      _
    $region31: #{tpu_custom_call.1} parent=1 // pred_check_branch
      %60 = sbr.rel (0) target = $region33
    $region32: #{tpu_custom_call.1} parent=1 // pred_region
      %61 = dma.done [#allocation6], 1024
    $region33: #{tpu_custom_call.1} parent=1 // pred_fallthru
      _
    %v63 = vld [vmem:[#allocation2] sm:$0xff]
    %v64 = vld [vmem:[#allocation2 + $0x8] sm:$0xff]
    %v65 = vpack.c.bf16 %v64, %v63
    %v66 = vld [vmem:[#allocation5] sm:$0xf]
    %v67 = vld [vmem:[#allocation5 + $0x4] sm:$0xf]
    %v68 = vld [vmem:[#allocation5 + $0x8] sm:$0xf]
    %v69 = vld [vmem:[#allocation5 + $0xc] sm:$0xf]
    %v70 = vld [vmem:[#allocation5 + $0x10] sm:$0xf]
    %v71 = vld [vmem:[#allocation5 + $0x14] sm:$0xf]
    %v72 = vld [vmem:[#allocation5 + $0x18] sm:$0xf]
    %v73 = vld [vmem:[#allocation5 + $0x1c] sm:$0xf]
    %v74 = vld [vmem:[#allocation5 + $0x20] sm:$0xf]
    %v75 = vld [vmem:[#allocation5 + $0x24] sm:$0xf]
    %v76 = vld [vmem:[#allocation5 + $0x28] sm:$0xf]
    %v77 = vld [vmem:[#allocation5 + $0x2c] sm:$0xf]
    %v78 = vld [vmem:[#allocation5 + $0x30] sm:$0xf]
    %v79 = vld [vmem:[#allocation5 + $0x34] sm:$0xf]
    %v80 = vld [vmem:[#allocation5 + $0x38] sm:$0xf]
    %v81 = vld [vmem:[#allocation5 + $0x3c] sm:$0xf]
    %v82 = vld [vmem:[%s2] sm:$0x1]
    %v84 = vlaneseq
    %v85 = vshrl.u32 %v84, 7
    %v86 = vsub.s32 0, %v85
    %v87 = vrot.slane %v82, %v86
    %v105 = vunpack.c.l.b16 %v66
    %v106 = vunpack.c.l.b16 %v67
    %v107 = vunpack.c.l.b16 %v68
    %v108 = vunpack.c.l.b16 %v69
    %v109 = vunpack.c.l.b16 %v70
    %v110 = vunpack.c.l.b16 %v71
    %v111 = vunpack.c.l.b16 %v72
    %v112 = vunpack.c.l.b16 %v73
    %v113 = vunpack.c.l.b16 %v74
    %v114 = vunpack.c.l.b16 %v75
    %v115 = vunpack.c.l.b16 %v76
    %v116 = vunpack.c.l.b16 %v77
    %v117 = vunpack.c.l.b16 %v78
    %v118 = vunpack.c.l.b16 %v79
    %v119 = vunpack.c.l.b16 %v80
    %v120 = vunpack.c.l.b16 %v81
    %v121 = vpack.c.b16 %v106, %v105
    %v122 = vpack.c.b16 %v108, %v107
    %v123 = vpack.c.b16 %v110, %v109
    %v124 = vpack.c.b16 %v112, %v111
    %v125 = vpack.c.b16 %v114, %v113
    %v126 = vpack.c.b16 %v116, %v115
    %v127 = vpack.c.b16 %v118, %v117
    %v128 = vpack.c.b16 %v120, %v119
    %137 = vmatprep.subr.bf16.mxu0 0
    %138 = vmatpush1.bf16.msra.mxu0 %v128
    %139 = vmatprep.subr.bf16.mxu0 0
    %140 = vmatpush1.bf16.msra.mxu0 %v127
    %141 = vmatprep.subr.bf16.mxu0 0
    %142 = vmatpush1.bf16.msra.mxu0 %v126
    %143 = vmatprep.subr.bf16.mxu0 0
    %144 = vmatpush1.bf16.msra.mxu0 %v125
    %145 = vmatprep.subr.bf16.mxu0 0
    %146 = vmatpush1.bf16.msra.mxu0 %v124
    %147 = vmatprep.subr.bf16.mxu0 0
    %148 = vmatpush1.bf16.msra.mxu0 %v123
    %149 = vmatprep.subr.bf16.mxu0 0
    %150 = vmatpush1.bf16.msra.mxu0 %v122
    %151 = vmatprep.subr.bf16.mxu0 0
    %152 = vmatpush1.bf16.msra.mxu0 %v121
    %153 = vmatprep.subr.bf16.mxu0 0
    %154 = vmatpush2.bf16.msra.mxu0 0
    %155 = vmatprep.subr.bf16.mxu0 0
    %156 = vmatpush2.bf16.msra.mxu0 0
    %157 = vmatprep.subr.bf16.mxu0 0
    %158 = vmatpush2.bf16.msra.mxu0 0
    %159 = vmatprep.subr.bf16.mxu0 0
    %160 = vmatpush2.bf16.msra.mxu0 0
    %161 = vmatprep.subr.bf16.mxu0 0
    %162 = vmatpush2.bf16.msra.mxu0 0
    %163 = vmatprep.subr.bf16.mxu0 0
    %164 = vmatpush2.bf16.msra.mxu0 0
    %165 = vmatprep.subr.bf16.mxu0 0
    %166 = vmatpush2.bf16.msra.mxu0 0
    %167 = vmatprep.subr.bf16.mxu0 0
    %168 = vmatpush2.bf16.msra.mxu0 0
    %169 = vmatprep.mubr.bf16.mxu0 0
    %170 = vmatmul.mubr.bf16.gmra.mxu0 %v65
    %v171 = vpop.f32.mrf.mxu0
    %v172 = vadd.f32 %v87, %v171
    %v173 = vpop.f32.mrf.mxu0
    %v174 = vpop.f32.mrf.mxu0
    %v175 = vadd.f32 %v87, %v174
    %v176 = vpop.f32.mrf.mxu0
    %177 = vdwg.mxu0
    %v178 = vmax.f32 %v172, 0.0
    %v179 = vmax.f32 %v175, 0.0
    %v180 = vpack.c.bf16 %v179, %v178
    %v181 = vld [vmem:[#allocation7] sm:$0xf]
    %v182 = vld [vmem:[#allocation7 + $0x4] sm:$0xf]
    %v183 = vld [vmem:[#allocation7 + $0x8] sm:$0xf]
    %v184 = vld [vmem:[#allocation7 + $0xc] sm:$0xf]
    %v185 = vld [vmem:[#allocation7 + $0x10] sm:$0xf]
    %v186 = vld [vmem:[#allocation7 + $0x14] sm:$0xf]
    %v187 = vld [vmem:[#allocation7 + $0x18] sm:$0xf]
    %v188 = vld [vmem:[#allocation7 + $0x1c] sm:$0xf]
    %v189 = vld [vmem:[#allocation7 + $0x20] sm:$0xf]
    %v190 = vld [vmem:[#allocation7 + $0x24] sm:$0xf]
    %v191 = vld [vmem:[#allocation7 + $0x28] sm:$0xf]
    %v192 = vld [vmem:[#allocation7 + $0x2c] sm:$0xf]
    %v193 = vld [vmem:[#allocation7 + $0x30] sm:$0xf]
    %v194 = vld [vmem:[#allocation7 + $0x34] sm:$0xf]
    %v195 = vld [vmem:[#allocation7 + $0x38] sm:$0xf]
    %v196 = vld [vmem:[#allocation7 + $0x3c] sm:$0xf]
    %v197 = vld [vmem:[%s4] sm:$0x1]
    %v199 = vlaneseq
    %v200 = vshrl.u32 %v199, 7
    %v201 = vsub.s32 0, %v200
    %v202 = vrot.slane %v197, %v201
    %v220 = vunpack.c.l.b16 %v181
    %v221 = vunpack.c.l.b16 %v182
    %v222 = vunpack.c.l.b16 %v183
    %v223 = vunpack.c.l.b16 %v184
    %v224 = vunpack.c.l.b16 %v185
    %v225 = vunpack.c.l.b16 %v186
    %v226 = vunpack.c.l.b16 %v187
    %v227 = vunpack.c.l.b16 %v188
    %v228 = vunpack.c.l.b16 %v189
    %v229 = vunpack.c.l.b16 %v190
    %v230 = vunpack.c.l.b16 %v191
    %v231 = vunpack.c.l.b16 %v192
    %v232 = vunpack.c.l.b16 %v193
    %v233 = vunpack.c.l.b16 %v194
    %v234 = vunpack.c.l.b16 %v195
    %v235 = vunpack.c.l.b16 %v196
    %v236 = vpack.c.b16 %v221, %v220
    %v237 = vpack.c.b16 %v223, %v222
    %v238 = vpack.c.b16 %v225, %v224
    %v239 = vpack.c.b16 %v227, %v226
    %v240 = vpack.c.b16 %v229, %v228
    %v241 = vpack.c.b16 %v231, %v230
    %v242 = vpack.c.b16 %v233, %v232
    %v243 = vpack.c.b16 %v235, %v234
    %252 = vmatprep.subr.bf16.mxu0 0
    %253 = vmatpush1.bf16.msra.mxu0 %v243
    %254 = vmatprep.subr.bf16.mxu0 0
    %255 = vmatpush1.bf16.msra.mxu0 %v242
    %256 = vmatprep.subr.bf16.mxu0 0
    %257 = vmatpush1.bf16.msra.mxu0 %v241
    %258 = vmatprep.subr.bf16.mxu0 0
    %259 = vmatpush1.bf16.msra.mxu0 %v240
    %260 = vmatprep.subr.bf16.mxu0 0
    %261 = vmatpush1.bf16.msra.mxu0 %v239
    %262 = vmatprep.subr.bf16.mxu0 0
    %263 = vmatpush1.bf16.msra.mxu0 %v238
    %264 = vmatprep.subr.bf16.mxu0 0
    %265 = vmatpush1.bf16.msra.mxu0 %v237
    %266 = vmatprep.subr.bf16.mxu0 0
    %267 = vmatpush1.bf16.msra.mxu0 %v236
    %268 = vmatprep.subr.bf16.mxu0 0
    %269 = vmatpush2.bf16.msra.mxu0 0
    %270 = vmatprep.subr.bf16.mxu0 0
    %271 = vmatpush2.bf16.msra.mxu0 0
    %272 = vmatprep.subr.bf16.mxu0 0
    %273 = vmatpush2.bf16.msra.mxu0 0
    %274 = vmatprep.subr.bf16.mxu0 0
    %275 = vmatpush2.bf16.msra.mxu0 0
    %276 = vmatprep.subr.bf16.mxu0 0
    %277 = vmatpush2.bf16.msra.mxu0 0
    %278 = vmatprep.subr.bf16.mxu0 0
    %279 = vmatpush2.bf16.msra.mxu0 0
    %280 = vmatprep.subr.bf16.mxu0 0
    %281 = vmatpush2.bf16.msra.mxu0 0
    %282 = vmatprep.subr.bf16.mxu0 0
    %283 = vmatpush2.bf16.msra.mxu0 0
    %284 = vmatprep.mubr.bf16.mxu0 0
    %285 = vmatmul.mubr.bf16.gmra.mxu0 %v180
    %v286 = vpop.f32.mrf.mxu0
    %v287 = vadd.f32 %v202, %v286
    %v288 = vpop.f32.mrf.mxu0
    %v289 = vpop.f32.mrf.mxu0
    %v290 = vadd.f32 %v202, %v289
    %v291 = vpop.f32.mrf.mxu0
    %292 = vdwg.mxu0
    %293 = vst [vmem:[#allocation8] sm:$0xff] %v287
    %294 = vst [vmem:[#allocation8 + $0x8] sm:$0xff] %v290
    // Predicated region
    $region34: #{tpu_custom_call.1} parent=1 // pred_check
      _
    $region35: #{tpu_custom_call.1} parent=1 // pred_check_branch
      %296 = sbr.rel (0) target = $region37
    $region36: #{tpu_custom_call.1} parent=1 // pred_region
      %s298 = ssub.s32 256, 256
      %299 = vsyncadd [#allocation4], %s298
      %s300 = sshll.u32 [#allocation8], 4
      %s301 = int_to_ptr.vmem [resolvable:$true] %s300
      %306 = dma.vmem_to_hbm [thread:$0]  %s301, 256, %s5, [#allocation4], 128, 128, 8
    $region37: #{tpu_custom_call.1} parent=1 // pred_fallthru
      _
    // Predicated region
    $region38: #{tpu_custom_call.1} parent=1 // pred_check
      _
    $region39: #{tpu_custom_call.1} parent=1 // pred_check_branch
      %308 = sbr.rel (0) target = $region41
    $region40: #{tpu_custom_call.1} parent=1 // pred_region
      %309 = dma.done [#allocation4], 256
    $region41: #{tpu_custom_call.1} parent=1 // pred_fallthru
      _
    %310 = vsyncpa [#allocation3], 1
    %311 = vsyncpa [#allocation6], 1
    %312 = vsyncpa [#allocation4], 1

</llo_original>
